<compile_context>
chip_gen: v7x
topology: tpu7x:2x2x1
jax: 0.10.0
libtpu: 0.0.40
codegen_flags: <defaults>
</compile_context>

<pallas_src>
import functools

import jax
import jax.numpy as jnp
from jax.experimental import pallas as pl
from jax.experimental.pallas import tpu as pltpu

_EPS = 1e-12  # F.normalize default eps


def _contrastive_loss_kernel(p1_ref, z2_ref, p2_ref, z1_ref, out_ref, *,
                             batch, block_batch, blocks_per_core, needs_mask,
                             compute_dtype, approx_recip):
    """Accumulate sum_rows[ dot(q,k) / (||q||_1 * ||k||_1) ] for both pairs.

    out_ref is a (1,1,1) f32 partial accumulator, one per core (leading
    "parallel" grid axis); it stays resident across the inner "arbitrary"
    batch-block axis.  Final scaling happens in the wrapper.
    """
    c = pl.program_id(0)   # per-TensorCore shard ("parallel")
    i = pl.program_id(1)   # batch-block reduction ("arbitrary")

    @pl.when(i == 0)
    def _init():
        out_ref[...] = jnp.zeros_like(out_ref)

    def _pair(q_ref, k_ref):
        q = q_ref[...]
        k = k_ref[...]
        if q.dtype != compute_dtype:
            q = q.astype(compute_dtype)
            k = k.astype(compute_dtype)
        # Folded L1-normalized cosine term per row:
        #   sum_d (q/||q||_1)*(k/||k||_1) == sum_d(q*k) * (1/||q||_1) * (1/||k||_1)
        # Reductions accumulate in f32 regardless of elementwise dtype.
        dot = jnp.sum(q * k, axis=1, keepdims=True, dtype=jnp.float32)
        nq = jnp.maximum(
            jnp.sum(jnp.abs(q), axis=1, keepdims=True, dtype=jnp.float32), _EPS)
        nk = jnp.maximum(
            jnp.sum(jnp.abs(k), axis=1, keepdims=True, dtype=jnp.float32), _EPS)
        # Two separate reciprocals: avoids f32 overflow of nq*nk for large D.
        return (dot
                * pl.reciprocal(nq, approx=approx_recip)
                * pl.reciprocal(nk, approx=approx_recip))

    # Process the two pairs one after the other: only one pair's tiles are
    # live (widened) at a time -> lower vreg/VMEM pressure at large tiles.
    per_row = _pair(p1_ref, z2_ref)
    per_row = per_row + _pair(p2_ref, z1_ref)          # (TB, 1) f32

    gblk = c * blocks_per_core + i                     # global batch-block idx

    if needs_mask:
        is_full = (gblk + 1) * block_batch <= batch

        @pl.when(is_full)
        def _acc_full():
            out_ref[...] += jnp.sum(per_row)

        @pl.when(jnp.logical_not(is_full))
        def _acc_partial():
            # Rows past the true batch (partial last tile, or overflow steps on
            # the last core when the block count is odd) contribute zero.
            row = gblk * block_batch + jax.lax.broadcasted_iota(
                jnp.int32, per_row.shape, 0)
            out_ref[...] += jnp.sum(jnp.where(row < batch, per_row, 0.0))
    else:
        out_ref[...] += jnp.sum(per_row)


def _round_up(x, m):
    return ((x + m - 1) // m) * m


def _vmem_budget_and_limit():
    """(tile budget, vmem_limit_bytes), keyed off physical VMEM when known."""
    budget, limit = 16 << 20, 32 << 20        # safe everywhere incl. v7x (64 MiB)
    try:
        cap = pltpu.get_tpu_info().vmem_capacity_bytes
        if cap is not None and int(cap) >= (100 << 20):   # v5e / v6e: 128 MiB
            budget, limit = 40 << 20, 64 << 20
    except Exception:
        pass
    return budget, limit


def _pick_block_batch(batch, feat, itemsize, vmem_budget_bytes, sublane):
    """Largest batch tile s.t. 4 inputs x 2 pipeline bufs x TB x D fits budget."""
    max_tb = vmem_budget_bytes // (4 * 2 * feat * itemsize)
    tb = max(int(max_tb), sublane)
    tb = max((tb // sublane) * sublane, sublane)        # dtype-native sublane align
    tb = min(tb, _round_up(batch, sublane))             # never bigger than (padded) B
    return tb


def contrastive_loss(encs, projs, *, use_cossim_loss=True, cossim_loss_alpha=1.0,
                     block_batch=None, num_cores=2, force_f32_compute=False):
    """JAX/Pallas equivalent of ContrastiveLoss.forward.

    encs = (z1, z2), projs = (p1, p2); each tensor is (B, D).
    Returns a dict of losses, matching the PyTorch module.
    Set force_f32_compute=True on v5e (no bf16 VPU/EUP).
    """
    losses = {}
    if not use_cossim_loss:
        return losses

    z1, z2 = encs
    p1, p2 = projs
    assert p1.shape == p2.shape == z1.shape == z2.shape and p1.ndim == 2

    B, D = p1.shape
    dtype = jnp.dtype(p1.dtype)
    itemsize = dtype.itemsize
    sublane = max(8, 32 // max(itemsize, 1))            # 8 f32 / 16 bf16 / 32 int8

    budget, vmem_limit = _vmem_budget_and_limit()
    if block_batch is None:
        tb = _pick_block_batch(B, D, itemsize, budget, sublane)
    else:
        tb = max(_round_up(int(block_batch), sublane), sublane)

    grid_b = pl.cdiv(B, tb)                             # real batch blocks
    nc = max(1, min(int(num_cores), grid_b))            # never split below 1 blk/core
    bpc = pl.cdiv(grid_b, nc)                           # blocks per core
    needs_mask = (nc * bpc * tb) != B                   # partial or overflow blocks
    max_blk = grid_b - 1

    compute_dtype = (dtype if (dtype == jnp.bfloat16 and not force_f32_compute)
                     else jnp.float32)
    approx_recip = compute_dtype != jnp.float32         # approx rcp only on bf16 path

    kernel = functools.partial(
        _contrastive_loss_kernel,
        batch=B, block_batch=tb, blocks_per_core=bpc, needs_mask=needs_mask,
        compute_dtype=compute_dtype, approx_recip=approx_recip)

    def _in_map(c, i):
        # Clamp so overflow steps (last core, ragged block count) stay in bounds;
        # their rows are zeroed by the in-kernel mask.
        return (jnp.minimum(c * bpc + i, max_blk), 0)

    in_spec = pl.BlockSpec((tb, D), _in_map)

    cost = pl.CostEstimate(
        flops=12 * B * D,                   # mul+add (dot) + abs+add (two L1), x2 pairs
        transcendentals=4 * B,
        bytes_accessed=4 * B * D * itemsize + nc * 4)

    partial_sums = pl.pallas_call(
        kernel,
        out_shape=jax.ShapeDtypeStruct((nc, 1, 1), jnp.float32),
        grid=(nc, bpc),
        in_specs=[in_spec, in_spec, in_spec, in_spec],
        # One resident accumulator block per core; revisited across the i axis.
        out_specs=pl.BlockSpec((1, 1, 1), lambda c, i: (c, 0, 0)),
        compiler_params=pltpu.CompilerParams(
            dimension_semantics=("parallel", "arbitrary"),
            vmem_limit_bytes=vmem_limit),
        cost_estimate=cost,
    )(p1, z2, p2, z1)

    scale = -0.5 * float(cossim_loss_alpha) / float(B)
    # TODO(synk): .detach() on z1/z2 is gradient-only; forward value unaffected.
    losses["C"] = jnp.sum(partial_sums) * scale
    return losses


def _reference_loss(encs, projs, alpha):
    """Pure-JAX f32 reference mirroring the PyTorch math (normalize-then-sum)."""
    def neg_cos(q, k):
        q = q.astype(jnp.float32)
        k = k.astype(jnp.float32)
        nq = q / jnp.maximum(jnp.sum(jnp.abs(q), axis=1, keepdims=True), _EPS)
        nk = k / jnp.maximum(jnp.sum(jnp.abs(k), axis=1, keepdims=True), _EPS)
        return -jnp.mean(jnp.sum(nq * nk, axis=1))

    z1, z2 = encs
    p1, p2 = projs
    return (neg_cos(p1, z2) + neg_cos(p2, z1)) * 0.5 * alpha


if __name__ == "__main__":
    key = jax.random.PRNGKey(0)
    ks = jax.random.split(key, 12)

    # --- Test 1: small SimSiam-style f32 shapes, single block, single core. ---
    B, D = 8, 128
    z1 = jax.random.normal(ks[0], (B, D), dtype=jnp.float32)
    z2 = jax.random.normal(ks[1], (B, D), dtype=jnp.float32)
    p1 = jax.random.normal(ks[2], (B, D), dtype=jnp.float32)
    p2 = jax.random.normal(ks[3], (B, D), dtype=jnp.float32)

    alpha = 0.5
    losses = contrastive_loss((z1, z2), (p1, p2),
                              use_cossim_loss=True, cossim_loss_alpha=alpha)
    loss_c = jax.block_until_ready(losses["C"])
    ref = jax.block_until_ready(_reference_loss((z1, z2), (p1, p2), alpha))
    assert jnp.allclose(loss_c, ref, atol=1e-5, rtol=1e-5), (loss_c, ref)

    # --- Test 2: f32, B not a multiple of the tile; 2-core split with an odd
    #     block count (exercises clamp + partial-tile mask + overflow mask). ---
    B2, D2 = 20, 256
    z1b = jax.random.normal(ks[4], (B2, D2), dtype=jnp.float32)
    z2b = jax.random.normal(ks[5], (B2, D2), dtype=jnp.float32)
    p1b = jax.random.normal(ks[6], (B2, D2), dtype=jnp.float32)
    p2b = jax.random.normal(ks[7], (B2, D2), dtype=jnp.float32)

    losses2 = contrastive_loss((z1b, z2b), (p1b, p2b),
                               use_cossim_loss=True, cossim_loss_alpha=1.0,
                               block_batch=8, num_cores=2)
    loss_c2 = jax.block_until_ready(losses2["C"])
    ref2 = jax.block_until_ready(_reference_loss((z1b, z2b), (p1b, p2b), 1.0))
    assert jnp.allclose(loss_c2, ref2, atol=1e-5, rtol=1e-5), (loss_c2, ref2)

    # --- Test 3: bf16 inputs -> bf16 elementwise path + approx reciprocal. ---
    B3, D3 = 48, 256
    z1c = jax.random.normal(ks[8], (B3, D3), dtype=jnp.bfloat16)
    z2c = jax.random.normal(ks[9], (B3, D3), dtype=jnp.bfloat16)
    p1c = jax.random.normal(ks[10], (B3, D3), dtype=jnp.bfloat16)
    p2c = jax.random.normal(ks[11], (B3, D3), dtype=jnp.bfloat16)

    losses3 = contrastive_loss((z1c, z2c), (p1c, p2c),
                               use_cossim_loss=True, cossim_loss_alpha=1.0,
                               block_batch=16, num_cores=2)
    loss_c3 = jax.block_until_ready(losses3["C"])
    ref3 = jax.block_until_ready(_reference_loss((z1c, z2c), (p1c, p2c), 1.0))
    assert jnp.allclose(loss_c3, ref3, atol=5e-5, rtol=5e-2), (loss_c3, ref3)

    # use_cossim_loss=False returns an empty dict, matching the module.
    assert contrastive_loss((z1, z2), (p1, p2), use_cossim_loss=False) == {}

    print("KERNEL_OK")
</pallas_src>

<mosaic_0001>
module attributes {stable_mosaic.version = 11 : i64} {
  func.func @_contrastive_loss_kernel(%arg0: i32, %arg1: i32, %arg2: memref<8x128xf32, #tpu.memory_space<vmem>>, %arg3: memref<8x128xf32, #tpu.memory_space<vmem>>, %arg4: memref<8x128xf32, #tpu.memory_space<vmem>>, %arg5: memref<8x128xf32, #tpu.memory_space<vmem>>, %arg6: memref<1x1x1xf32, #tpu.memory_space<vmem>>) attributes {dimension_semantics = [#tpu.dimension_semantics<parallel>, #tpu.dimension_semantics<arbitrary>], iteration_bounds = array<i64: 1, 1>, scalar_prefetch = 0 : i64, scratch_operands = 0 : i64, tpu.core_type = #tpu.core_type<tc>, window_params = [{transform_indices = @transform_0, window_bounds = array<i64: 8, 128>}, {transform_indices = @transform_1, window_bounds = array<i64: 8, 128>}, {transform_indices = @transform_2, window_bounds = array<i64: 8, 128>}, {transform_indices = @transform_3, window_bounds = array<i64: 8, 128>}, {transform_indices = @transform_4, window_bounds = array<i64: 1, 1, 1>}]} {
    %c0_i32 = arith.constant 0 : i32
    %0 = arith.cmpi eq, %arg1, %c0_i32 : i32
    %1 = arith.extui %0 : i1 to i32
    %c0_i32_0 = arith.constant 0 : i32
    %2 = arith.cmpi ne, %1, %c0_i32_0 : i32
    scf.if %2 {
      %cst_24 = arith.constant 0.000000e+00 : f32
      %50 = vector.broadcast %cst_24 : f32 to vector<1x1x1xf32>
      %c0_25 = arith.constant 0 : index
      %c0_26 = arith.constant 0 : index
      %c0_27 = arith.constant 0 : index
      %51 = vector.load %arg6[%c0_25, %c0_26, %c0_27] : memref<1x1x1xf32, #tpu.memory_space<vmem>>, vector<1x1x1xf32>
      tpu.vector_store %arg6[%c0_25, %c0_26, %c0_27], %50 {strides = array<i32>} : memref<1x1x1xf32, #tpu.memory_space<vmem>>, vector<1x1x1xf32>,
    } else {
    }
    %c0 = arith.constant 0 : index
    %c0_1 = arith.constant 0 : index
    %3 = vector.load %arg2[%c0, %c0_1] : memref<8x128xf32, #tpu.memory_space<vmem>>, vector<8x128xf32>
    %c0_2 = arith.constant 0 : index
    %c0_3 = arith.constant 0 : index
    %4 = vector.load %arg3[%c0_2, %c0_3] : memref<8x128xf32, #tpu.memory_space<vmem>>, vector<8x128xf32>
    %5 = arith.mulf %3, %4 : vector<8x128xf32>
    %cst = arith.constant dense<0.000000e+00> : vector<8xf32>
    %6 = vector.multi_reduction <add>, %5, %cst [1] : vector<8x128xf32> to vector<8xf32>
    %7 = vector.shape_cast %6 : vector<8xf32> to vector<8x1xf32>
    %8 = math.absf %3 : vector<8x128xf32>
    %cst_4 = arith.constant dense<0.000000e+00> : vector<8xf32>
    %9 = vector.multi_reduction <add>, %8, %cst_4 [1] : vector<8x128xf32> to vector<8xf32>
    %10 = vector.shape_cast %9 : vector<8xf32> to vector<8x1xf32>
    %cst_5 = arith.constant 9.99999996E-13 : f32
    %11 = vector.broadcast %cst_5 : f32 to vector<8x1xf32>
    %12 = arith.maximumf %10, %11 : vector<8x1xf32>
    %13 = math.absf %4 : vector<8x128xf32>
    %cst_6 = arith.constant dense<0.000000e+00> : vector<8xf32>
    %14 = vector.multi_reduction <add>, %13, %cst_6 [1] : vector<8x128xf32> to vector<8xf32>
    %15 = vector.shape_cast %14 : vector<8xf32> to vector<8x1xf32>
    %cst_7 = arith.constant 9.99999996E-13 : f32
    %16 = vector.broadcast %cst_7 : f32 to vector<8x1xf32>
    %17 = arith.maximumf %15, %16 : vector<8x1xf32>
    %18 = tpu.reciprocal %12 : vector<8x1xf32> -> vector<8x1xf32>
    %19 = arith.mulf %7, %18 : vector<8x1xf32>
    %20 = tpu.reciprocal %17 : vector<8x1xf32> -> vector<8x1xf32>
    %21 = arith.mulf %19, %20 : vector<8x1xf32>
    %c0_8 = arith.constant 0 : index
    %c0_9 = arith.constant 0 : index
    %22 = vector.load %arg4[%c0_8, %c0_9] : memref<8x128xf32, #tpu.memory_space<vmem>>, vector<8x128xf32>
    %c0_10 = arith.constant 0 : index
    %c0_11 = arith.constant 0 : index
    %23 = vector.load %arg5[%c0_10, %c0_11] : memref<8x128xf32, #tpu.memory_space<vmem>>, vector<8x128xf32>
    %24 = arith.mulf %22, %23 : vector<8x128xf32>
    %cst_12 = arith.constant dense<0.000000e+00> : vector<8xf32>
    %25 = vector.multi_reduction <add>, %24, %cst_12 [1] : vector<8x128xf32> to vector<8xf32>
    %26 = vector.shape_cast %25 : vector<8xf32> to vector<8x1xf32>
    %27 = math.absf %22 : vector<8x128xf32>
    %cst_13 = arith.constant dense<0.000000e+00> : vector<8xf32>
    %28 = vector.multi_reduction <add>, %27, %cst_13 [1] : vector<8x128xf32> to vector<8xf32>
    %29 = vector.shape_cast %28 : vector<8xf32> to vector<8x1xf32>
    %cst_14 = arith.constant 9.99999996E-13 : f32
    %30 = vector.broadcast %cst_14 : f32 to vector<8x1xf32>
    %31 = arith.maximumf %29, %30 : vector<8x1xf32>
    %32 = math.absf %23 : vector<8x128xf32>
    %cst_15 = arith.constant dense<0.000000e+00> : vector<8xf32>
    %33 = vector.multi_reduction <add>, %32, %cst_15 [1] : vector<8x128xf32> to vector<8xf32>
    %34 = vector.shape_cast %33 : vector<8xf32> to vector<8x1xf32>
    %cst_16 = arith.constant 9.99999996E-13 : f32
    %35 = vector.broadcast %cst_16 : f32 to vector<8x1xf32>
    %36 = arith.maximumf %34, %35 : vector<8x1xf32>
    %37 = tpu.reciprocal %31 : vector<8x1xf32> -> vector<8x1xf32>
    %38 = arith.mulf %26, %37 : vector<8x1xf32>
    %39 = tpu.reciprocal %36 : vector<8x1xf32> -> vector<8x1xf32>
    %40 = arith.mulf %38, %39 : vector<8x1xf32>
    %41 = arith.addf %21, %40 : vector<8x1xf32>
    %c0_17 = arith.constant 0 : index
    %c0_18 = arith.constant 0 : index
    %c0_19 = arith.constant 0 : index
    %42 = vector.load %arg6[%c0_17, %c0_18, %c0_19] : memref<1x1x1xf32, #tpu.memory_space<vmem>>, vector<1x1x1xf32>
    %43 = vector.shape_cast %41 : vector<8x1xf32> to vector<1x8x1xf32>
    %cst_20 = arith.constant dense<0.000000e+00> : vector<1xf32>
    %44 = vector.multi_reduction <add>, %43, %cst_20 [1, 2] : vector<1x8x1xf32> to vector<1xf32>
    %45 = vector.shape_cast %44 : vector<1xf32> to vector<1x1x1xf32>
    %46 = vector.extract %45[0, 0, 0] : f32 from vector<1x1x1xf32>
    %47 = vector.broadcast %46 : f32 to vector<1x1x1xf32>
    %48 = arith.addf %42, %47 : vector<1x1x1xf32>
    %c0_21 = arith.constant 0 : index
    %c0_22 = arith.constant 0 : index
    %c0_23 = arith.constant 0 : index
    %49 = vector.load %arg6[%c0_21, %c0_22, %c0_23] : memref<1x1x1xf32, #tpu.memory_space<vmem>>, vector<1x1x1xf32>
    tpu.vector_store %arg6[%c0_21, %c0_22, %c0_23], %48 {strides = array<i32>} : memref<1x1x1xf32, #tpu.memory_space<vmem>>, vector<1x1x1xf32>,
    return
  }
  func.func @transform_0(%arg0: i32, %arg1: i32) -> (i32, i32) {
    %c1_i32 = arith.constant 1 : i32
    %0 = arith.muli %arg0, %c1_i32 : i32
    %1 = arith.addi %0, %arg1 : i32
    %c0_i32 = arith.constant 0 : i32
    %2 = arith.minsi %1, %c0_i32 : i32
    %c0_i32_0 = arith.constant 0 : i32
    %c0_i32_1 = arith.constant 0 : i32
    return %2, %c0_i32_0 : i32, i32
  }
  func.func @transform_1(%arg0: i32, %arg1: i32) -> (i32, i32) {
    %c1_i32 = arith.constant 1 : i32
    %0 = arith.muli %arg0, %c1_i32 : i32
    %1 = arith.addi %0, %arg1 : i32
    %c0_i32 = arith.constant 0 : i32
    %2 = arith.minsi %1, %c0_i32 : i32
    %c0_i32_0 = arith.constant 0 : i32
    %c0_i32_1 = arith.constant 0 : i32
    return %2, %c0_i32_0 : i32, i32
  }
  func.func @transform_2(%arg0: i32, %arg1: i32) -> (i32, i32) {
    %c1_i32 = arith.constant 1 : i32
    %0 = arith.muli %arg0, %c1_i32 : i32
    %1 = arith.addi %0, %arg1 : i32
    %c0_i32 = arith.constant 0 : i32
    %2 = arith.minsi %1, %c0_i32 : i32
    %c0_i32_0 = arith.constant 0 : i32
    %c0_i32_1 = arith.constant 0 : i32
    return %2, %c0_i32_0 : i32, i32
  }
  func.func @transform_3(%arg0: i32, %arg1: i32) -> (i32, i32) {
    %c1_i32 = arith.constant 1 : i32
    %0 = arith.muli %arg0, %c1_i32 : i32
    %1 = arith.addi %0, %arg1 : i32
    %c0_i32 = arith.constant 0 : i32
    %2 = arith.minsi %1, %c0_i32 : i32
    %c0_i32_0 = arith.constant 0 : i32
    %c0_i32_1 = arith.constant 0 : i32
    return %2, %c0_i32_0 : i32, i32
  }
  func.func @transform_4(%arg0: i32, %arg1: i32) -> (i32, i32, i32) {
    %c0_i32 = arith.constant 0 : i32
    %c0_i32_0 = arith.constant 0 : i32
    %c0_i32_1 = arith.constant 0 : i32
    return %arg0, %c0_i32, %c0_i32_0 : i32, i32, i32
  }
}

</mosaic_0001>

<llo_original>
// kernel: tpu_custom_call.1
$region0: #{tpu_custom_call.1}
  #allocation0 [shape = 'u32[]', space=smem, size = 0x4, offset = 0x4, fixed_abs, tag = 'smem constant byte address 0x4 - core index']
  #allocation1 [shape = 'u32[144,128]{1,0:T(1,128)}', space=vmem, size = 0x12000, scoped, tag = 'internal scratch']
  %s0 = inlined_call_operand.hbm [shape: f32[8,128], index: 0, kind: input, shape index: {}]
  %s1 = inlined_call_operand.hbm [shape: f32[8,128], index: 1, kind: input, shape index: {}]
  %s2 = inlined_call_operand.hbm [shape: f32[8,128], index: 2, kind: input, shape index: {}]
  %s3 = inlined_call_operand.vmem [shape: f32[8,128], index: 3, kind: input, shape index: {}]
  %s4 = inlined_call_operand.hbm [shape: f32[1,1,1], index: 4, kind: output, shape index: {}]
  %s5 = sld [smem:[#allocation0]]
  $region42: #{tpu_custom_call.1} parent=0
    _
  %s7 = ssub.s32 1, %s5
  %s8 = scalar_select 0, %s7, %s5
  $region1: #{tpu_custom_call.1} parent=0
    #allocation2 [shape = 'u8[4096]{0}', space=vmem, size = 0x1000, scoped, tag = 'input window, operand 0, single buffered']
    #allocation3 [shape = 's32[1]{0}', space=sflag, size = 0x4, scoped, tag = 'scoped memory for tpu_custom_call.1']
    #allocation4 [shape = 's32[1]{0}', space=sflag, size = 0x4, scoped, tag = 'scoped memory for tpu_custom_call.1']
    #allocation5 [shape = 'u8[4096]{0}', space=vmem, size = 0x1000, scoped, tag = 'input window, operand 1, single buffered']
    #allocation6 [shape = 's32[1]{0}', space=sflag, size = 0x4, scoped, tag = 'scoped memory for tpu_custom_call.1']
    #allocation7 [shape = 'u8[4096]{0}', space=vmem, size = 0x1000, scoped, tag = 'input window, operand 2, single buffered']
    #allocation8 [shape = 'u8[512]{0}', space=vmem, size = 0x400, scoped, tag = 'output window, operand 0, single buffered']
    %9 = vsyncpa [#allocation3], 0
    %10 = vsyncpa [#allocation6], 0
    %11 = vsyncpa [#allocation4], 0
    // Predicated region
    $region2: #{tpu_custom_call.1} parent=1 // pred_check
      _
    $region3: #{tpu_custom_call.1} parent=1 // pred_check_branch
      %13 = sbr.rel (0) target = $region5
    $region4: #{tpu_custom_call.1} parent=1 // pred_region
      %s14 = sadd.s32 0, 0
      %p15 = scmp.lt.s32.totalorder %s14, 0
      %s16 = scalar_select %p15, %s14, 0
      %s18 = ssub.s32 128, 128
      %19 = vsyncadd [#allocation3], %s18
      %s20 = smul.addr %s16, 128
      %s21 = scalar_lea.hbm %s0, %s20
      %s23 = sshll.u32 [#allocation2], 4
      %s24 = int_to_ptr.vmem [resolvable:$true] %s23
      %26 = dma.hbm_to_vmem [thread:$0]  %s21, 128, %s24, [#allocation3]
    $region5: #{tpu_custom_call.1} parent=1 // pred_fallthru
      _
    // Predicated region
    $region6: #{tpu_custom_call.1} parent=1 // pred_check
      _
    $region7: #{tpu_custom_call.1} parent=1 // pred_check_branch
      %28 = sbr.rel (0) target = $region9
    $region8: #{tpu_custom_call.1} parent=1 // pred_region
      %s29 = sadd.s32 0, 0
      %p30 = scmp.lt.s32.totalorder %s29, 0
      %s31 = scalar_select %p30, %s29, 0
      %s33 = ssub.s32 128, 128
      %34 = vsyncadd [#allocation6], %s33
      %s35 = smul.addr %s31, 128
      %s36 = scalar_lea.hbm %s1, %s35
      %s38 = sshll.u32 [#allocation5], 4
      %s39 = int_to_ptr.vmem [resolvable:$true] %s38
      %41 = dma.hbm_to_vmem [thread:$0]  %s36, 128, %s39, [#allocation6]
    $region9: #{tpu_custom_call.1} parent=1 // pred_fallthru
      _
    // Predicated region
    $region10: #{tpu_custom_call.1} parent=1 // pred_check
      _
    $region11: #{tpu_custom_call.1} parent=1 // pred_check_branch
      %43 = sbr.rel (0) target = $region13
    $region12: #{tpu_custom_call.1} parent=1 // pred_region
      %s44 = sadd.s32 0, 0
      %p45 = scmp.lt.s32.totalorder %s44, 0
      %s46 = scalar_select %p45, %s44, 0
      %s48 = ssub.s32 128, 128
      %49 = vsyncadd [#allocation6], %s48
      %s50 = smul.addr %s46, 128
      %s51 = scalar_lea.hbm %s2, %s50
      %s53 = sshll.u32 [#allocation7], 4
      %s54 = int_to_ptr.vmem [resolvable:$true] %s53
      %56 = dma.hbm_to_vmem [thread:$0]  %s51, 128, %s54, [#allocation6]
    $region13: #{tpu_custom_call.1} parent=1 // pred_fallthru
      _
    // Predicated region
    $region14: #{tpu_custom_call.1} parent=1 // pred_check
      _
    $region15: #{tpu_custom_call.1} parent=1 // pred_check_branch
      %58 = sbr.rel (0) target = $region17
    $region16: #{tpu_custom_call.1} parent=1 // pred_region
      %s59 = sadd.s32 0, 0
      %p60 = scmp.lt.s32.totalorder %s59, 0
      %s61 = scalar_select %p60, %s59, 0
      %p62 = scmp.lt.s32.totalorder %s61, 0
      %s63 = scalar_select %p62, %s61, 0
      %s64 = smul.addr %s63, 8
      %s65 = scalar_lea.vmem %s3, %s64
      %s66 = sadd.s32 0, 0
      %p67 = scmp.lt.s32.totalorder %s66, 0
      %s68 = scalar_select %p67, %s66, 0
    $region17: #{tpu_custom_call.1} parent=1 // pred_fallthru
      _
    // Predicated region
    $region18: #{tpu_custom_call.1} parent=1 // pred_check
      _
    $region19: #{tpu_custom_call.1} parent=1 // pred_check_branch
      %70 = sbr.rel (0) target = $region21
    $region20: #{tpu_custom_call.1} parent=1 // pred_region
      %71 = dma.done [#allocation3], 128
    $region21: #{tpu_custom_call.1} parent=1 // pred_fallthru
      _
    // Predicated region
    $region22: #{tpu_custom_call.1} parent=1 // pred_check
      _
    $region23: #{tpu_custom_call.1} parent=1 // pred_check_branch
      %73 = sbr.rel (0) target = $region25
    $region24: #{tpu_custom_call.1} parent=1 // pred_region
      %74 = dma.done [#allocation6], 128
    $region25: #{tpu_custom_call.1} parent=1 // pred_fallthru
      _
    // Predicated region
    $region26: #{tpu_custom_call.1} parent=1 // pred_check
      _
    $region27: #{tpu_custom_call.1} parent=1 // pred_check_branch
      %76 = sbr.rel (0) target = $region29
    $region28: #{tpu_custom_call.1} parent=1 // pred_region
      %77 = dma.done [#allocation6], 128
    $region29: #{tpu_custom_call.1} parent=1 // pred_fallthru
      _
    %s78 = sadd.s32 0, 0
    %p79 = scmp.lt.s32.totalorder %s78, 0
    %s80 = scalar_select %p79, %s78, 0
    %p81 = scmp.lt.s32.totalorder %s80, 0
    %s82 = scalar_select %p81, %s80, 0
    %s83 = smul.addr %s82, 8
    %s84 = scalar_lea.vmem %s3, %s83
    %s85 = sadd.s32 0, 0
    %p86 = scmp.lt.s32.totalorder %s85, 0
    %s87 = scalar_select %p86, %s85, 0
    %s88 = sadd.s32 0, 0
    %p89 = scmp.lt.s32.totalorder %s88, 0
    %s90 = scalar_select %p89, %s88, 0
    %s91 = sadd.s32 0, 0
    %p92 = scmp.lt.s32.totalorder %s91, 0
    %s93 = scalar_select %p92, %s91, 0
    %s94 = sadd.s32 0, 0
    %p95 = scmp.lt.s32.totalorder %s94, 0
    %s96 = scalar_select %p95, %s94, 0
    %p97 = scmp.lt.s32.totalorder %s96, 0
    %s98 = scalar_select %p97, %s96, 0
    %s99 = smul.addr %s98, 8
    %s100 = scalar_lea.vmem %s3, %s99
    %s101 = sadd.s32 0, 0
    %p102 = scmp.lt.s32.totalorder %s101, 0
    %s103 = scalar_select %p102, %s101, 0
    %p104 = scmp.eq.s32.totalorder 0, 0
    // Predicated region
    $region30: #{tpu_custom_call.1} parent=1 // pred_check
      %p105 = pneg %p104
    $region31: #{tpu_custom_call.1} parent=1 // pred_check_branch
      %107 = sbr.rel (%p105) target = $region33
    $region32: #{tpu_custom_call.1} parent=1 // pred_region
      %vm108 = vcmask 0
      %109 = vst.msk [vmem:[#allocation8] sm:$0x1] %vm108, 0.0
    $region33: #{tpu_custom_call.1} parent=1 // pred_fallthru
      _
    %v110 = vld [vmem:[#allocation2] sm:$0xff]
    %v111 = vld [vmem:[#allocation5] sm:$0xff]
    %v112 = vmul.f32 %v110, %v111
    %113 = vadd.xlane.f32.xlu0 %v112
    %v114 = vpop.xlane.xlu0 %113
    %v115 = vand.u32 2147483647, %v110
    %116 = vadd.xlane.f32.xlu0 %v115
    %v117 = vpop.xlane.xlu0 %116
    %v118 = vmax.f32 %v117, 1e-12
    %v119 = vand.u32 2147483647, %v111
    %120 = vadd.xlane.f32.xlu0 %v119
    %v121 = vpop.xlane.xlu0 %120
    %v122 = vmax.f32 %v121, 1e-12
    %v123 = vrcp.pop %v118
    %v124 = vmul.f32 %v114, %v123
    %v125 = vrcp.pop %v122
    %v126 = vmul.f32 %v124, %v125
    %v127 = vld [vmem:[#allocation7] sm:$0xff]
    %v128 = vld [vmem:[%s100] sm:$0xff]
    %v129 = vmul.f32 %v127, %v128
    %130 = vadd.xlane.f32.xlu0 %v129
    %v131 = vpop.xlane.xlu0 %130
    %v132 = vand.u32 2147483647, %v127
    %133 = vadd.xlane.f32.xlu0 %v132
    %v134 = vpop.xlane.xlu0 %133
    %v135 = vmax.f32 %v134, 1e-12
    %v136 = vand.u32 2147483647, %v128
    %137 = vadd.xlane.f32.xlu0 %v136
    %v138 = vpop.xlane.xlu0 %137
    %v139 = vmax.f32 %v138, 1e-12
    %v140 = vrcp.pop %v135
    %v141 = vmul.f32 %v131, %v140
    %v142 = vrcp.pop %v139
    %v143 = vmul.f32 %v141, %v142
    %v144 = vadd.f32 %v126, %v143
    %v145 = vld [vmem:[#allocation8] sm:$0x1]
    %vm146 = vcmask 7168
    %v147 = vsel %vm146, %v144, 0.0
    %148 = vadd.xlane.f32.xlu0 %v147
    %v149 = vpop.xlane.xlu0 %148
    %v150 = vrot.slane %v149, 4
    %v151 = vadd.f32 %v149, %v150
    %v152 = vrot.slane %v151, 2
    %v153 = vadd.f32 %v151, %v152
    %v154 = vrot.slane %v153, 1
    %v155 = vadd.f32 %v153, %v154
    %s156 = vtos %v155
    %v157 = vstv %s156
    %v158 = vadd.f32 %v145, %v157
    %vm159 = vcmask 0
    %160 = vst.msk [vmem:[#allocation8] sm:$0x1] %vm159, %v158
    // Predicated region
    $region34: #{tpu_custom_call.1} parent=1 // pred_check
      _
    $region35: #{tpu_custom_call.1} parent=1 // pred_check_branch
      %162 = sbr.rel (0) target = $region37
    $region36: #{tpu_custom_call.1} parent=1 // pred_region
      %s164 = ssub.s32 16, 16
      %165 = vsyncadd [#allocation4], %s164
      %s167 = sshll.u32 [#allocation8], 4
      %s168 = int_to_ptr.vmem [resolvable:$true] %s167
      %170 = dma.vmem_to_hbm [thread:$0]  %s168, 16, %s4, [#allocation4]
    $region37: #{tpu_custom_call.1} parent=1 // pred_fallthru
      _
    // Predicated region
    $region38: #{tpu_custom_call.1} parent=1 // pred_check
      _
    $region39: #{tpu_custom_call.1} parent=1 // pred_check_branch
      %172 = sbr.rel (0) target = $region41
    $region40: #{tpu_custom_call.1} parent=1 // pred_region
      %173 = dma.done [#allocation4], 16
    $region41: #{tpu_custom_call.1} parent=1 // pred_fallthru
      _
    %174 = vsyncpa [#allocation3], 1
    %175 = vsyncpa [#allocation6], 1
    %176 = vsyncpa [#allocation4], 1

</llo_original>
